<compile_context>
chip_gen: v5e
topology: v5e:2x2
jax: 0.10.0
libtpu: 0.0.40
codegen_flags: <defaults>
</compile_context>

<pallas_src>
import functools

import jax
import jax.numpy as jnp
from jax.experimental import pallas as pl
from jax.experimental.pallas import tpu as pltpu


def _round_up(x: int, m: int) -> int:
    return ((x + m - 1) // m) * m


def _cdiv(a: int, b: int) -> int:
    return (a + b - 1) // b


def _bag_average_kernel(f_ref, w_ref, b_ref, o_ref, *scratch, inv_n, n_valid,
                        mask_remainder, single_n_block):
    """Grid = (bag_blocks, n_blocks); grid axis 1 (N) is the reduction axis.

    f_ref  : (TB, TN, D)  feature tile, native dtype / native (B, N, D) layout
    w_ref  : (D, C_pad)   bf16 classifier weight (VMEM-resident)
    b_ref  : (1, C_pad)   f32 classifier bias, padded lanes = -1e30 (resident)
    o_ref  : (TB, C_pad)  f32 output probabilities
    scratch: () if the reduction axis is collapsed, else ((TB, D) f32 acc,)
    """
    x = f_ref[...]                                     # (TB, TN, D)
    if mask_remainder:
        # Last N tile overruns the array: zero the out-of-range rows.
        j = pl.program_id(1)
        tn, d = x.shape[1], x.shape[2]
        row = jax.lax.broadcasted_iota(jnp.int32, (tn, d), 0)
        valid = (j * tn + row) < n_valid
        x = jnp.where(valid, x, 0)
    # Partial per-bag sum, accumulated in f32 regardless of feature dtype.
    s = jnp.sum(x.astype(jnp.float32), axis=1)         # (TB, D)

    def _finalize(total):
        mean = total * inv_n                            # single 1/N scale
        # bf16 x bf16 MXU matmul with f32 accumulation.
        logits = jnp.dot(mean.astype(w_ref.dtype), w_ref[...],
                         preferred_element_type=jnp.float32)
        logits = logits + b_ref[...]                    # padded lanes -> -1e30
        m = jnp.max(logits, axis=-1, keepdims=True)
        e = jnp.exp(logits - m)
        denom = jnp.sum(e, axis=-1, keepdims=True)
        inv = pl.reciprocal(denom, approx=True)         # EUP slot
        inv = inv * (2.0 - denom * inv)                 # one Newton step
        o_ref[...] = (e * inv).astype(o_ref.dtype)

    if single_n_block:
        _finalize(s)
    else:
        acc_ref = scratch[0]
        j = pl.program_id(1)

        @pl.when(j == 0)
        def _():
            acc_ref[...] = s                            # store, no zero-init

        @pl.when(j > 0)
        def _():
            acc_ref[...] += s

        @pl.when(j == pl.num_programs(1) - 1)
        def _():
            _finalize(acc_ref[...])


def bag_average_batched(features, weight, bias, *, block_bags=128,
                        block_n=None, feature_vmem_bytes=32 * 1024 * 1024):
    """Batched BagAverage forward (eval mode).

    features: (B, N, D) -- B independent bags of N feature vectors (any float
              dtype; DMA'd as-is, accumulated in f32 inside the kernel).
    weight:   (D, C)    -- classifier weight (transposed nn.Linear W).
    bias:     (C,)
    Returns (probs with shape (B, C) f32, 0).
    """
    b, n, d = features.shape
    c = weight.shape[1]
    assert n > 0, "bag must contain at least one feature vector"

    # ---- Classifier params: lane-dense (multiple-of-128) class dim. -------
    c_pad = _round_up(c, 128)
    w_p = weight
    if c_pad > c:
        w_p = jnp.pad(weight, ((0, 0), (0, c_pad - c)))    # zero cols
    w_p = w_p.astype(jnp.bfloat16)
    b_p = bias.astype(jnp.float32)
    if c_pad > c:
        # Padded class lanes get a huge negative bias -> zero softmax weight,
        # so the kernel needs no iota/where masking.
        b_p = jnp.concatenate([b_p, jnp.full((c_pad - c,), -1e30,
                                             jnp.float32)])
    b_p = b_p.reshape(1, c_pad)

    itemsize = jnp.dtype(features.dtype).itemsize
    sub = max(8, 8 * (4 // max(itemsize, 1)))   # sublane packing multiple

    # ---- Bag tile: multiple of 8; >=2 parallel blocks when possible so both
    # v7x TensorCores get work (no effect on single-TC v5e/v6e). -------------
    tb = min(_round_up(block_bags, 8), _round_up(b, 8))
    bag_blocks = _cdiv(b, tb)
    if bag_blocks == 1 and b > 8:
        tb = _round_up(_cdiv(b, 2), 8)
        bag_blocks = _cdiv(b, tb)
    b_pad = bag_blocks * tb                      # output rows (sliced below)

    # ---- Bag-size tile: collapse the reduction axis when it fits VMEM. ----
    per_buffer = feature_vmem_bytes // 2         # double-buffered features
    max_tn = max(1, per_buffer // max(1, tb * d * itemsize))
    tn = n if block_n is None else min(block_n, n)
    tn = min(tn, max_tn)
    if tn < n:
        tn = max(sub, (tn // sub) * sub)         # tiled tile: sublane multiple
        if tn >= n:
            tn = n
    n_blocks = _cdiv(n, tn)
    single_n_block = n_blocks == 1
    mask_remainder = (not single_n_block) and (n % tn != 0)

    grid = (bag_blocks, n_blocks)
    kernel = functools.partial(_bag_average_kernel, inv_n=1.0 / n, n_valid=n,
                               mask_remainder=mask_remainder,
                               single_n_block=single_n_block)
    scratch = [] if single_n_block else [pltpu.VMEM((tb, d), jnp.float32)]

    probs = pl.pallas_call(
        kernel,
        out_shape=jax.ShapeDtypeStruct((b_pad, c_pad), jnp.float32),
        grid_spec=pltpu.PrefetchScalarGridSpec(
            num_scalar_prefetch=0,
            grid=grid,
            in_specs=[
                # Features in native (B, N, D) layout & dtype -- no wrapper
                # pad / transpose / cast (no extra HBM passes).
                pl.BlockSpec((tb, tn, d), lambda i, j: (i, j, 0)),
                # Weight / bias: constant index_map -> VMEM-resident.
                pl.BlockSpec((d, c_pad), lambda i, j: (0, 0)),
                pl.BlockSpec((1, c_pad), lambda i, j: (0, 0)),
            ],
            out_specs=pl.BlockSpec((tb, c_pad), lambda i, j: (i, 0)),
            scratch_shapes=scratch,
        ),
        compiler_params=pltpu.CompilerParams(
            dimension_semantics=("parallel", "arbitrary"),
            vmem_limit_bytes=48 * 1024 * 1024,   # safe on v7x's 64 MiB VMEM
        ),
    )(features, w_p, b_p)

    return probs[:b, :c], 0


def bag_average_forward(features, weight, bias):
    """Single-bag forward matching the PyTorch module signature.

    features: (N, D) -> (probs (C,), 0)
    """
    probs, aux = bag_average_batched(features[None], weight, bias,
                                     block_bags=8)
    return probs[0], aux


if __name__ == "__main__":
    POOLING_DIM = 128    # pooling_dim
    NUM_REL_CLS = 101    # num_rel_cls
    B = 16               # bags batched into one pallas_call
    N = 16               # feature vectors per bag

    key = jax.random.PRNGKey(0)
    k_f, k_w, k_b, k_f2 = jax.random.split(key, 4)

    features = jax.random.normal(k_f, (B, N, POOLING_DIM), dtype=jnp.float32)

    # Deterministic nn.Linear-style init: U(-1/sqrt(D), 1/sqrt(D)).
    bound = 1.0 / (POOLING_DIM ** 0.5)
    weight = jax.random.uniform(k_w, (POOLING_DIM, NUM_REL_CLS),
                                minval=-bound, maxval=bound,
                                dtype=jnp.float32)
    bias = jax.random.uniform(k_b, (NUM_REL_CLS,),
                              minval=-bound, maxval=bound, dtype=jnp.float32)

    def reference(f):
        mean = jnp.mean(f, axis=1)
        return jax.nn.softmax(mean @ weight + bias, axis=-1)

    # 1) Default path: reduction axis collapsed (grid n_blocks == 1), bag axis
    #    split into >= 2 parallel blocks.
    probs, aux = bag_average_batched(features, weight, bias)
    probs = jax.block_until_ready(probs)
    assert probs.shape == (B, NUM_REL_CLS)
    assert aux == 0
    # bf16 MXU operands -> ~1e-3-level logit error; probs well inside 2e-3.
    assert jnp.allclose(probs, reference(features), atol=2e-3, rtol=0)
    assert jnp.allclose(jnp.sum(probs, axis=-1), 1.0, atol=1e-4)

    # 2) Tiled-reduction path: N = 20 with block_n = 8 exercises the in-kernel
    #    remainder mask; B = 5 exercises the out-of-bounds bag tail (sliced).
    f2 = jax.random.normal(k_f2, (5, 20, POOLING_DIM), dtype=jnp.float32)
    probs2, aux2 = bag_average_batched(f2, weight, bias, block_bags=8,
                                       block_n=8)
    probs2 = jax.block_until_ready(probs2)
    assert probs2.shape == (5, NUM_REL_CLS)
    assert aux2 == 0
    assert jnp.allclose(probs2, reference(f2), atol=2e-3, rtol=0)

    # 3) Single-bag path (module-equivalent signature).
    p1, a1 = bag_average_forward(features[0], weight, bias)
    p1 = jax.block_until_ready(p1)
    assert p1.shape == (NUM_REL_CLS,)
    assert a1 == 0
    assert jnp.allclose(p1, reference(features)[0], atol=2e-3, rtol=0)

    print("KERNEL_OK")
</pallas_src>

<mosaic_0001>
module attributes {stable_mosaic.version = 11 : i64} {
  func.func @_bag_average_kernel(%arg0: i32, %arg1: i32, %arg2: memref<8x16x128xf32, #tpu.memory_space<vmem>>, %arg3: memref<128x128xbf16, #tpu.memory_space<vmem>>, %arg4: memref<1x128xf32, #tpu.memory_space<vmem>>, %arg5: memref<8x128xf32, #tpu.memory_space<vmem>>) attributes {dimension_semantics = [#tpu.dimension_semantics<parallel>, #tpu.dimension_semantics<arbitrary>], iteration_bounds = array<i64: 2, 1>, scalar_prefetch = 0 : i64, scratch_operands = 0 : i64, tpu.core_type = #tpu.core_type<tc>, window_params = [{transform_indices = @transform_0, window_bounds = array<i64: 8, 16, 128>}, {pipeline_mode = #tpu.pipeline_mode<synchronous>, transform_indices = @transform_1, window_bounds = array<i64: 128, 128>}, {pipeline_mode = #tpu.pipeline_mode<synchronous>, transform_indices = @transform_2, window_bounds = array<i64: 1, 128>}, {transform_indices = @transform_3, window_bounds = array<i64: 8, 128>}]} {
    %c0 = arith.constant 0 : index
    %c0_0 = arith.constant 0 : index
    %c0_1 = arith.constant 0 : index
    %0 = vector.load %arg2[%c0, %c0_0, %c0_1] : memref<8x16x128xf32, #tpu.memory_space<vmem>>, vector<8x16x128xf32>
    %cst = arith.constant dense<0.000000e+00> : vector<8x128xf32>
    %1 = vector.multi_reduction <add>, %0, %cst [1] : vector<8x16x128xf32> to vector<8x128xf32>
    %cst_2 = arith.constant 6.250000e-02 : f32
    %2 = vector.broadcast %cst_2 : f32 to vector<8x128xf32>
    %3 = arith.mulf %1, %2 : vector<8x128xf32>
    %4 = arith.truncf %3 : vector<8x128xf32> to vector<8x128xbf16>
    %c0_3 = arith.constant 0 : index
    %c0_4 = arith.constant 0 : index
    %5 = vector.load %arg3[%c0_3, %c0_4] : memref<128x128xbf16, #tpu.memory_space<vmem>>, vector<128x128xbf16>
    %cst_5 = arith.constant dense<0.000000e+00> : vector<8x128xf32>
    %6 = tpu.matmul %4, %5, %cst_5 {dimension_numbers = #tpu.dot_dimension_numbers<[1], [0], [0], [1], [0, 0, 1, 1], [], []>} : vector<8x128xbf16>, vector<128x128xbf16>, vector<8x128xf32> -> vector<8x128xf32>
    %c0_6 = arith.constant 0 : index
    %c0_7 = arith.constant 0 : index
    %7 = vector.load %arg4[%c0_6, %c0_7] : memref<1x128xf32, #tpu.memory_space<vmem>>, vector<1x128xf32>
    %8 = vector.broadcast %7 : vector<1x128xf32> to vector<8x128xf32>
    %9 = arith.addf %6, %8 : vector<8x128xf32>
    %cst_8 = arith.constant dense<0xFF800000> : vector<8xf32>
    %10 = vector.multi_reduction <maximumf>, %9, %cst_8 [1] : vector<8x128xf32> to vector<8xf32>
    %11 = vector.shape_cast %10 : vector<8xf32> to vector<8x1xf32>
    %12 = vector.broadcast %11 : vector<8x1xf32> to vector<8x128xf32>
    %13 = arith.subf %9, %12 : vector<8x128xf32>
    %14 = math.exp %13 : vector<8x128xf32>
    %cst_9 = arith.constant dense<0.000000e+00> : vector<8xf32>
    %15 = vector.multi_reduction <add>, %14, %cst_9 [1] : vector<8x128xf32> to vector<8xf32>
    %16 = vector.shape_cast %15 : vector<8xf32> to vector<8x1xf32>
    %17 = tpu.reciprocal %16 {approx = true} : vector<8x1xf32> -> vector<8x1xf32>
    %18 = arith.mulf %16, %17 : vector<8x1xf32>
    %cst_10 = arith.constant 2.000000e+00 : f32
    %19 = vector.broadcast %cst_10 : f32 to vector<8x1xf32>
    %20 = arith.subf %19, %18 : vector<8x1xf32>
    %21 = arith.mulf %17, %20 : vector<8x1xf32>
    %22 = vector.broadcast %21 : vector<8x1xf32> to vector<8x128xf32>
    %23 = arith.mulf %14, %22 : vector<8x128xf32>
    %c0_11 = arith.constant 0 : index
    %c0_12 = arith.constant 0 : index
    %24 = vector.load %arg5[%c0_11, %c0_12] : memref<8x128xf32, #tpu.memory_space<vmem>>, vector<8x128xf32>
    tpu.vector_store %arg5[%c0_11, %c0_12], %23 {strides = array<i32>} : memref<8x128xf32, #tpu.memory_space<vmem>>, vector<8x128xf32>,
    return
  }
  func.func @transform_0(%arg0: i32, %arg1: i32) -> (i32, i32, i32) {
    %c0_i32 = arith.constant 0 : i32
    %c0_i32_0 = arith.constant 0 : i32
    return %arg0, %arg1, %c0_i32 : i32, i32, i32
  }
  func.func @transform_1(%arg0: i32, %arg1: i32) -> (i32, i32) {
    %c0_i32 = arith.constant 0 : i32
    %c0_i32_0 = arith.constant 0 : i32
    %c0_i32_1 = arith.constant 0 : i32
    return %c0_i32, %c0_i32_0 : i32, i32
  }
  func.func @transform_2(%arg0: i32, %arg1: i32) -> (i32, i32) {
    %c0_i32 = arith.constant 0 : i32
    %c0_i32_0 = arith.constant 0 : i32
    %c0_i32_1 = arith.constant 0 : i32
    return %c0_i32, %c0_i32_0 : i32, i32
  }
  func.func @transform_3(%arg0: i32, %arg1: i32) -> (i32, i32) {
    %c0_i32 = arith.constant 0 : i32
    %c0_i32_0 = arith.constant 0 : i32
    return %arg0, %c0_i32 : i32, i32
  }
}

</mosaic_0001>

<llo_original>
// kernel: tpu_custom_call.1
$region0: #{tpu_custom_call.1}
  #allocation0 [shape = 'u32[]', space=smem, size = 0x4, offset = 0x4, fixed_abs, tag = 'smem constant byte address 0x4 - core index']
  #allocation1 [shape = 'u32[72,128]{1,0:T(1,128)}', space=vmem, size = 0x9000, scoped, tag = 'internal scratch']
  %s0 = inlined_call_operand.hbm [shape: f32[16,16,128], index: 0, kind: input, shape index: {}]
  %s1 = inlined_call_operand.hbm [shape: bf16[128,128], index: 1, kind: input, shape index: {}]
  %s2 = inlined_call_operand.vmem [shape: f32[1,128], index: 2, kind: input, shape index: {}]
  %s3 = inlined_call_operand.hbm [shape: f32[16,128], index: 3, kind: output, shape index: {}]
  %s4 = sld [smem:[#allocation0]]
  $region53: #{tpu_custom_call.1} parent=0
    _
  %s6 = ssub.s32 1, %s4
  %s7 = scalar_select 0, %s6, %s4
  $region1: #{tpu_custom_call.1} parent=0
    #allocation2 [shape = 'u8[131072]{0}', space=vmem, size = 0x20000, scoped, tag = 'input window, operand 0']
    #allocation3 [shape = 's32[2]{0}', space=sflag, size = 0x8, scoped, tag = 'scoped memory for tpu_custom_call.1']
    #allocation4 [shape = 's32[2]{0}', space=sflag, size = 0x8, scoped, tag = 'scoped memory for tpu_custom_call.1']
    #allocation5 [shape = 'u8[32768]{0}', space=vmem, size = 0x8000, scoped, tag = 'input window, operand 1, single buffered']
    #allocation6 [shape = 's32[1]{0}', space=sflag, size = 0x4, scoped, tag = 'scoped memory for tpu_custom_call.1']
    #allocation7 [shape = 'u8[8192]{0}', space=vmem, size = 0x2000, scoped, tag = 'output window, operand 0']
    %8 = vsyncpa [#allocation3], 0
    %s9 = scalar_lea.sflag [#allocation3], 1
    %10 = vsyncpa %s9, 0
    %11 = vsyncpa [#allocation6], 0
    %12 = vsyncpa [#allocation4], 0
    %s13 = scalar_lea.sflag [#allocation4], 1
    %14 = vsyncpa %s13, 0
    loop: start=0, step=1, limit=4
    $region2: #{tpu_custom_call.1} parent=1 // loop_pre_header
      _
    $region3: #{tpu_custom_call.1} parent=1 // loop_header
      %s16 = sphi 0, %s20
      %p17 = scmp.ge.s32.totalorder %s16, 4
      %s23 = sphi 0, %s35
      %s24 = sphi 0, %s31
      %s25 = sphi 0, %s23
      %s26 = sphi 0, %s24
      %s27 = sphi 0, %s25
      %s28 = sphi 0, %s26
      %s40 = sphi 0, %s42
      %s43 = sphi 0, %s40
      %s44 = sphi 0, %s43
      %s60 = sphi 0, %s44
      %s64 = sphi 0, %s64
      %s66 = sphi 0, %s64
      %s67 = sphi 0, %s66
      %s81 = sphi 0, %s67
      %s85 = sphi 0, %s85
      %s87 = sphi 0, %s85
      %s88 = sphi 0, %s87
      %s102 = sphi 0, %s88
      %s108 = sphi 0, %s110
      %s111 = sphi 0, %s108
      %s112 = sphi 0, %s111
      %s128 = sphi 0, %s112
    $region4: #{tpu_custom_call.1} parent=1 // loop_header_branch
      %19 = sbr.rel (%p17) target = $region8
    $region5: #{tpu_custom_call.1} parent=1 // loop_body
      %s21 = ssub.s32 %s16, 1
      %s22 = ssub.s32 %s16, 2
      %s29 = sadd.s32 1, %s24
      %p30 = scmp.ge.s32.totalorder %s29, 1
      %s31 = scalar_select %p30, 0, %s29
      %s32 = sadd.s32 1, %s23
      %s33 = scalar_select %p30, %s32, %s23
      %p34 = scmp.ge.s32.totalorder %s33, 2
      %s35 = scalar_select %p34, 0, %s33
      %s36 = ssub.s32 %s23, %s35
      %s37 = ssub.s32 %s24, %s31
      %s38 = sor.u32 %s36, %s37
      %p39 = scmp.eq.s32.totalorder %s38, 0
      %s41 = sadd.s32 %s40, 1
      %s42 = scalar_select %p39, %s40, %s41
      %p45 = pneg %p39
      %p46 = scmp.eq.s32.totalorder %s16, 1
      %p47 = por %p45, %p46
      %p48 = scmp.ne.s32.totalorder %s40, %s43
      %p49 = scmp.eq.s32.totalorder %s16, 0
      %p50 = por %p48, %p49
      %p51 = scmp.ne.s32.totalorder %s40, %s43
      %p52 = scmp.eq.s32.totalorder %s21, 1
      %p53 = por %p51, %p52
      %p54 = scmp.ne.s32.totalorder %s43, %s44
      %p55 = scmp.eq.s32.totalorder %s21, 0
      %p56 = por %p54, %p55
      %p57 = scmp.ne.s32.totalorder %s43, %s44
      %p58 = scmp.eq.s32.totalorder %s22, 1
      %p59 = por %p57, %p58
      %p61 = scmp.ne.s32.totalorder %s44, %s60
      %p62 = scmp.eq.s32.totalorder %s22, 0
      %p63 = por %p61, %p62
      %s65 = sadd.s32 %s64, 1
      %p68 = scmp.eq.s32.totalorder %s16, 1
      %p69 = scmp.ne.s32.totalorder %s64, %s66
      %p70 = scmp.eq.s32.totalorder %s16, 0
      %p71 = por %p69, %p70
      %p72 = scmp.ne.s32.totalorder %s64, %s66
      %p73 = scmp.eq.s32.totalorder %s21, 1
      %p74 = por %p72, %p73
      %p75 = scmp.ne.s32.totalorder %s66, %s67
      %p76 = scmp.eq.s32.totalorder %s21, 0
      %p77 = por %p75, %p76
      %p78 = scmp.ne.s32.totalorder %s66, %s67
      %p79 = scmp.eq.s32.totalorder %s22, 1
      %p80 = por %p78, %p79
      %p82 = scmp.ne.s32.totalorder %s67, %s81
      %p83 = scmp.eq.s32.totalorder %s22, 0
      %p84 = por %p82, %p83
      %s86 = sadd.s32 %s85, 1
      %p89 = scmp.eq.s32.totalorder %s16, 1
      %p90 = scmp.ne.s32.totalorder %s85, %s87
      %p91 = scmp.eq.s32.totalorder %s16, 0
      %p92 = por %p90, %p91
      %p93 = scmp.ne.s32.totalorder %s85, %s87
      %p94 = scmp.eq.s32.totalorder %s21, 1
      %p95 = por %p93, %p94
      %p96 = scmp.ne.s32.totalorder %s87, %s88
      %p97 = scmp.eq.s32.totalorder %s21, 0
      %p98 = por %p96, %p97
      %p99 = scmp.ne.s32.totalorder %s87, %s88
      %p100 = scmp.eq.s32.totalorder %s22, 1
      %p101 = por %p99, %p100
      %p103 = scmp.ne.s32.totalorder %s88, %s102
      %p104 = scmp.eq.s32.totalorder %s22, 0
      %p105 = por %p103, %p104
      %s106 = ssub.s32 %s23, %s35
      %p107 = scmp.eq.s32.totalorder %s106, 0
      %s109 = sadd.s32 %s108, 1
      %s110 = scalar_select %p107, %s108, %s109
      %p113 = pneg %p107
      %p114 = scmp.eq.s32.totalorder %s16, 1
      %p115 = por %p113, %p114
      %p116 = scmp.ne.s32.totalorder %s108, %s111
      %p117 = scmp.eq.s32.totalorder %s16, 0
      %p118 = por %p116, %p117
      %p119 = scmp.ne.s32.totalorder %s108, %s111
      %p120 = scmp.eq.s32.totalorder %s21, 1
      %p121 = por %p119, %p120
      %p122 = scmp.ne.s32.totalorder %s111, %s112
      %p123 = scmp.eq.s32.totalorder %s21, 0
      %p124 = por %p122, %p123
      %p125 = scmp.ne.s32.totalorder %s111, %s112
      %p126 = scmp.eq.s32.totalorder %s22, 1
      %p127 = por %p125, %p126
      %p129 = scmp.ne.s32.totalorder %s112, %s128
      %p130 = scmp.eq.s32.totalorder %s22, 0
      %p131 = por %p129, %p130
      %p132 = scmp.le.s32.totalorder 1, %s16
      %p133 = scmp.lt.s32.totalorder %s16, 3
      %p134 = pnand %p132, %p133
      %p135 = pneg %p134
      // Predicated region
      $region9: #{tpu_custom_call.1} parent=5 // pred_check
        _
      $region10: #{tpu_custom_call.1} parent=5 // pred_check_branch
        %137 = sbr.rel (%p134) target = $region12
      $region11: #{tpu_custom_call.1} parent=5 // pred_region
        %s138 = ssub.s32 %s16, 1
        // Predicated region
        $region13: #{tpu_custom_call.1} parent=11 // pred_check
          %p139 = pneg %p77
        $region14: #{tpu_custom_call.1} parent=11 // pred_check_branch
          %141 = sbr.rel (%p139) target = $region16
        $region15: #{tpu_custom_call.1} parent=11 // pred_region
          %143 = vsyncadd [#allocation6], 0
          %s144 = sshll.u32 %s1, 4
          %s145 = int_to_ptr.hbm [resolvable:$true] %s144
          %s146 = sshll.u32 [#allocation5], 4
          %s147 = int_to_ptr.vmem [resolvable:$true] %s146
          %152 = dma.hbm_to_vmem [thread:$0]  %s145, 1024, %s147, [#allocation6], 64, 64, 4
        $region16: #{tpu_custom_call.1} parent=11 // pred_fallthru
          _
        // Predicated region
        $region17: #{tpu_custom_call.1} parent=11 // pred_check
          %p153 = pneg %p98
        $region18: #{tpu_custom_call.1} parent=11 // pred_check_branch
          %155 = sbr.rel (%p153) target = $region20
        $region19: #{tpu_custom_call.1} parent=11 // pred_region
          _
        $region20: #{tpu_custom_call.1} parent=11 // pred_fallthru
          _
      $region12: #{tpu_custom_call.1} parent=5 // pred_fallthru
        _
      %p156 = scmp.lt.s32.totalorder %s16, 2
      // Predicated region
      $region21: #{tpu_custom_call.1} parent=5 // pred_check
        %p157 = pneg %p156
      $region22: #{tpu_custom_call.1} parent=5 // pred_check_branch
        %159 = sbr.rel (%p157) target = $region24
      $region23: #{tpu_custom_call.1} parent=5 // pred_region
        // Predicated region
        $region25: #{tpu_custom_call.1} parent=23 // pred_check
          %p160 = pneg %p50
        $region26: #{tpu_custom_call.1} parent=23 // pred_check_branch
          %162 = sbr.rel (%p160) target = $region28
        $region27: #{tpu_custom_call.1} parent=23 // pred_region
          %s163 = sand.u32 %s40, 1
          %s164 = scalar_lea.sflag [#allocation3], %s163
          %s165 = sand.u32 %s40, 1
          %s166 = smul.addr %s165, 128
          %s167 = scalar_lea.vmem [#allocation2], %s166
          %s168 = smul.u32 8, %s23
          %s169 = smul.u32 2, %s24
          %171 = vsyncadd %s164, 0
          %s172 = smul.addr %s168, 2
          %s173 = sadd.s32 %s169, %s172
          %s174 = smul.addr %s173, 8
          %s175 = scalar_lea.hbm %s0, %s174
          %s176 = sshll.u32 %s175, 4
          %s177 = int_to_ptr.hbm [resolvable:$true] %s176
          %s178 = sshll.u32 %s167, 4
          %s179 = int_to_ptr.vmem [resolvable:$true] %s178
          %184 = dma.hbm_to_vmem [thread:$0]  %s177, 2048, %s179, %s164, 128, 128, 8
        $region28: #{tpu_custom_call.1} parent=23 // pred_fallthru
          _
      $region24: #{tpu_custom_call.1} parent=5 // pred_fallthru
        _
      %p185 = scmp.le.s32.totalorder 1, %s16
      %p186 = scmp.lt.s32.totalorder %s16, 3
      %p187 = pnand %p185, %p186
      %p188 = pneg %p187
      // Predicated region
      $region29: #{tpu_custom_call.1} parent=5 // pred_check
        _
      $region30: #{tpu_custom_call.1} parent=5 // pred_check_branch
        %190 = sbr.rel (%p187) target = $region32
      $region31: #{tpu_custom_call.1} parent=5 // pred_region
        %s191 = ssub.s32 %s16, 1
        %s192 = sand.u32 %s43, 1
        %s193 = scalar_lea.sflag [#allocation3], %s192
        %s194 = sand.u32 %s43, 1
        %s195 = smul.addr %s194, 128
        %s196 = scalar_lea.vmem [#allocation2], %s195
        // Predicated region
        $region33: #{tpu_custom_call.1} parent=31 // pred_check
          %p197 = pneg %p56
        $region34: #{tpu_custom_call.1} parent=31 // pred_check_branch
          %199 = sbr.rel (%p197) target = $region36
        $region35: #{tpu_custom_call.1} parent=31 // pred_region
          %201 = dma.done %s193, 2048
        $region36: #{tpu_custom_call.1} parent=31 // pred_fallthru
          _
        // Predicated region
        $region37: #{tpu_custom_call.1} parent=31 // pred_check
          %p202 = pneg %p77
        $region38: #{tpu_custom_call.1} parent=31 // pred_check_branch
          %204 = sbr.rel (%p202) target = $region40
        $region39: #{tpu_custom_call.1} parent=31 // pred_region
          %206 = dma.done [#allocation6], 1024
        $region40: #{tpu_custom_call.1} parent=31 // pred_fallthru
          _
        %s207 = sand.u32 %s43, 1
        %s208 = scalar_lea.sflag [#allocation3], %s207
        %s209 = sand.u32 %s43, 1
        %s210 = smul.addr %s209, 128
        %s211 = scalar_lea.vmem [#allocation2], %s210
        %p212 = pneg %p56
        %p213 = pneg %p53
        %p214 = pneg %p77
        %p215 = pneg %p74
        %p216 = pneg %p98
        %p217 = pneg %p95
        %p218 = pneg %p124
        %p219 = pneg %p121
        %s220 = sand.u32 %s111, 1
        %s221 = scalar_lea.sflag [#allocation4], %s220
        %s222 = sand.u32 %s111, 1
        %s223 = smul.addr %s222, 8
        %s224 = scalar_lea.vmem [#allocation7], %s223
        %s225 = smul.u32 8, %s25
        %s226 = smul.u32 2, %s26
        %v227 = vld [vmem:[%s196] sm:$0xff]
        %v228 = vld [vmem:[%s196 + $0x8] sm:$0xff]
        %v229 = vld [vmem:[%s196 + $0x10] sm:$0xff]
        %v230 = vld [vmem:[%s196 + $0x18] sm:$0xff]
        %v231 = vld [vmem:[%s196 + $0x20] sm:$0xff]
        %v232 = vld [vmem:[%s196 + $0x28] sm:$0xff]
        %v233 = vld [vmem:[%s196 + $0x30] sm:$0xff]
        %v234 = vld [vmem:[%s196 + $0x38] sm:$0xff]
        %v235 = vld [vmem:[%s196 + $0x40] sm:$0xff]
        %v236 = vld [vmem:[%s196 + $0x48] sm:$0xff]
        %v237 = vld [vmem:[%s196 + $0x50] sm:$0xff]
        %v238 = vld [vmem:[%s196 + $0x58] sm:$0xff]
        %v239 = vld [vmem:[%s196 + $0x60] sm:$0xff]
        %v240 = vld [vmem:[%s196 + $0x68] sm:$0xff]
        %v241 = vld [vmem:[%s196 + $0x70] sm:$0xff]
        %v242 = vld [vmem:[%s196 + $0x78] sm:$0xff]
        %v243 = vadd.f32 %v227, %v228
        %v244 = vrot.slane %v243, 4
        %v245 = vadd.f32 %v243, %v244
        %v246 = vrot.slane %v245, 2
        %v247 = vadd.f32 %v245, %v246
        %v248 = vrot.slane %v247, 1
        %v249 = vadd.f32 %v247, %v248
        %v250 = vadd.f32 %v229, %v230
        %v251 = vrot.slane %v250, 4
        %v252 = vadd.f32 %v250, %v251
        %v253 = vrot.slane %v252, 2
        %v254 = vadd.f32 %v252, %v253
        %v255 = vrot.slane %v254, 1
        %v256 = vadd.f32 %v254, %v255
        %v257 = vadd.f32 %v231, %v232
        %v258 = vrot.slane %v257, 4
        %v259 = vadd.f32 %v257, %v258
        %v260 = vrot.slane %v259, 2
        %v261 = vadd.f32 %v259, %v260
        %v262 = vrot.slane %v261, 1
        %v263 = vadd.f32 %v261, %v262
        %v264 = vadd.f32 %v233, %v234
        %v265 = vrot.slane %v264, 4
        %v266 = vadd.f32 %v264, %v265
        %v267 = vrot.slane %v266, 2
        %v268 = vadd.f32 %v266, %v267
        %v269 = vrot.slane %v268, 1
        %v270 = vadd.f32 %v268, %v269
        %v271 = vadd.f32 %v235, %v236
        %v272 = vrot.slane %v271, 4
        %v273 = vadd.f32 %v271, %v272
        %v274 = vrot.slane %v273, 2
        %v275 = vadd.f32 %v273, %v274
        %v276 = vrot.slane %v275, 1
        %v277 = vadd.f32 %v275, %v276
        %v278 = vadd.f32 %v237, %v238
        %v279 = vrot.slane %v278, 4
        %v280 = vadd.f32 %v278, %v279
        %v281 = vrot.slane %v280, 2
        %v282 = vadd.f32 %v280, %v281
        %v283 = vrot.slane %v282, 1
        %v284 = vadd.f32 %v282, %v283
        %v285 = vadd.f32 %v239, %v240
        %v286 = vrot.slane %v285, 4
        %v287 = vadd.f32 %v285, %v286
        %v288 = vrot.slane %v287, 2
        %v289 = vadd.f32 %v287, %v288
        %v290 = vrot.slane %v289, 1
        %v291 = vadd.f32 %v289, %v290
        %v292 = vadd.f32 %v241, %v242
        %v293 = vrot.slane %v292, 4
        %v294 = vadd.f32 %v292, %v293
        %v295 = vrot.slane %v294, 2
        %v296 = vadd.f32 %v294, %v295
        %v297 = vrot.slane %v296, 1
        %v298 = vadd.f32 %v296, %v297
        %v299 = vmul.f32 %v249, 0.0625
        %v300 = vmul.f32 %v256, 0.0625
        %v301 = vmul.f32 %v263, 0.0625
        %v302 = vmul.f32 %v270, 0.0625
        %v303 = vmul.f32 %v277, 0.0625
        %v304 = vmul.f32 %v284, 0.0625
        %v305 = vmul.f32 %v291, 0.0625
        %v306 = vmul.f32 %v298, 0.0625
        %v307 = vpack.c.bf16 %v299, %v299
        %v308 = vpack.c.bf16 %v300, %v300
        %v309 = vpack.c.bf16 %v301, %v301
        %v310 = vpack.c.bf16 %v302, %v302
        %v311 = vpack.c.bf16 %v303, %v303
        %v312 = vpack.c.bf16 %v304, %v304
        %v313 = vpack.c.bf16 %v305, %v305
        %v314 = vpack.c.bf16 %v306, %v306
        %v315 = vld [vmem:[#allocation5] sm:$0xf]
        %v316 = vld [vmem:[#allocation5 + $0x4] sm:$0xf]
        %v317 = vld [vmem:[#allocation5 + $0x8] sm:$0xf]
        %v318 = vld [vmem:[#allocation5 + $0xc] sm:$0xf]
        %v319 = vld [vmem:[#allocation5 + $0x10] sm:$0xf]
        %v320 = vld [vmem:[#allocation5 + $0x14] sm:$0xf]
        %v321 = vld [vmem:[#allocation5 + $0x18] sm:$0xf]
        %v322 = vld [vmem:[#allocation5 + $0x1c] sm:$0xf]
        %v323 = vld [vmem:[#allocation5 + $0x20] sm:$0xf]
        %v324 = vld [vmem:[#allocation5 + $0x24] sm:$0xf]
        %v325 = vld [vmem:[#allocation5 + $0x28] sm:$0xf]
        %v326 = vld [vmem:[#allocation5 + $0x2c] sm:$0xf]
        %v327 = vld [vmem:[#allocation5 + $0x30] sm:$0xf]
        %v328 = vld [vmem:[#allocation5 + $0x34] sm:$0xf]
        %v329 = vld [vmem:[#allocation5 + $0x38] sm:$0xf]
        %v330 = vld [vmem:[#allocation5 + $0x3c] sm:$0xf]
        %v331 = vld [vmem:[%s2] sm:$0x1]
        %v333 = vperm.slane %v331, 0
        %v343 = vunpack.c.l.b16 %v307
        %v344 = vunpack.c.l.b16 %v308
        %v345 = vunpack.c.l.b16 %v309
        %v346 = vunpack.c.l.b16 %v310
        %v347 = vunpack.c.l.b16 %v311
        %v348 = vunpack.c.l.b16 %v312
        %v349 = vunpack.c.l.b16 %v313
        %v350 = vunpack.c.l.b16 %v314
        %vm351 = vcmask 1041409
        %v352 = vsel %vm351, %v344, %v343
        %vm353 = vcmask 1042434
        %v354 = vsel %vm353, %v345, %v352
        %vm355 = vcmask 1043459
        %v356 = vsel %vm355, %v346, %v354
        %vm357 = vcmask 1044484
        %v358 = vsel %vm357, %v347, %v356
        %vm359 = vcmask 1045509
        %v360 = vsel %vm359, %v348, %v358
        %vm361 = vcmask 1046534
        %v362 = vsel %vm361, %v349, %v360
        %vm363 = vcmask 1047559
        %v364 = vsel %vm363, %v350, %v362
        %v365 = vpack.c.b16 %v364, %v364
        %v383 = vunpack.c.l.b16 %v315
        %v384 = vunpack.c.l.b16 %v316
        %v385 = vunpack.c.l.b16 %v317
        %v386 = vunpack.c.l.b16 %v318
        %v387 = vunpack.c.l.b16 %v319
        %v388 = vunpack.c.l.b16 %v320
        %v389 = vunpack.c.l.b16 %v321
        %v390 = vunpack.c.l.b16 %v322
        %v391 = vunpack.c.l.b16 %v323
        %v392 = vunpack.c.l.b16 %v324
        %v393 = vunpack.c.l.b16 %v325
        %v394 = vunpack.c.l.b16 %v326
        %v395 = vunpack.c.l.b16 %v327
        %v396 = vunpack.c.l.b16 %v328
        %v397 = vunpack.c.l.b16 %v329
        %v398 = vunpack.c.l.b16 %v330
        %v399 = vpack.c.b16 %v384, %v383
        %v400 = vpack.c.b16 %v386, %v385
        %v401 = vpack.c.b16 %v388, %v387
        %v402 = vpack.c.b16 %v390, %v389
        %v403 = vpack.c.b16 %v392, %v391
        %v404 = vpack.c.b16 %v394, %v393
        %v405 = vpack.c.b16 %v396, %v395
        %v406 = vpack.c.b16 %v398, %v397
        %415 = vmatpush.bf16.msra.mxu0 %v406
        %416 = vmatpush.bf16.msra.mxu0 %v405
        %417 = vmatpush.bf16.msra.mxu0 %v404
        %418 = vmatpush.bf16.msra.mxu0 %v403
        %419 = vmatpush.bf16.msra.mxu0 %v402
        %420 = vmatpush.bf16.msra.mxu0 %v401
        %421 = vmatpush.bf16.msra.mxu0 %v400
        %422 = vmatpush.bf16.msra.mxu0 %v399
        %423 = vmatmul.bf16.gmra.mxu0 %v365
        %v424 = vpop.f32.mrf.mxu0
        %v425 = vadd.f32 %v333, %v424
        %v426 = vpop.f32.mrf.mxu0
        %427 = vdwg.mxu0
        %428 = vmax.xlane.f32.xlu0 %v425
        %v429 = vpop.xlane.xlu0 %428
        %v430 = vsub.f32 %v425, %v429
        %v431 = vmul.f32 %v430, 1.442695
        %v432 = vpow.pop %v431
        %433 = vadd.xlane.f32.xlu0 %v432
        %v434 = vpop.xlane.xlu0 %433
        %v435 = vrcp.pop %v434
        %v436 = vmul.f32 %v434, %v435
        %v437 = vsub.f32 2.0, %v436
        %v438 = vmul.f32 %v435, %v437
        %v439 = vmul.f32 %v432, %v438
        %440 = vst [vmem:[%s224] sm:$0xff] %v439
        %s441 = sand.u32 %s111, 1
        %s442 = scalar_lea.sflag [#allocation4], %s441
        %s443 = sand.u32 %s111, 1
        %s444 = smul.addr %s443, 8
        %s445 = scalar_lea.vmem [#allocation7], %s444
        // Predicated region
        $region41: #{tpu_custom_call.1} parent=31 // pred_check
          %p446 = pneg %p121
        $region42: #{tpu_custom_call.1} parent=31 // pred_check_branch
          %448 = sbr.rel (%p446) target = $region44
        $region43: #{tpu_custom_call.1} parent=31 // pred_region
          %450 = vsyncadd %s442, 0
          %s451 = smul.addr %s25, 8
          %s452 = scalar_lea.hbm %s3, %s451
          %s454 = sshll.u32 %s445, 4
          %s455 = int_to_ptr.vmem [resolvable:$true] %s454
          %s456 = sshll.u32 %s452, 4
          %s457 = int_to_ptr.hbm [resolvable:$true] %s456
          %459 = dma.vmem_to_hbm [thread:$0]  %s455, 128, %s457, %s442
        $region44: #{tpu_custom_call.1} parent=31 // pred_fallthru
          _
      $region32: #{tpu_custom_call.1} parent=5 // pred_fallthru
        _
      %p460 = scmp.le.s32.totalorder 2, %s16
      // Predicated region
      $region45: #{tpu_custom_call.1} parent=5 // pred_check
        %p461 = pneg %p460
      $region46: #{tpu_custom_call.1} parent=5 // pred_check_branch
        %463 = sbr.rel (%p461) target = $region48
      $region47: #{tpu_custom_call.1} parent=5 // pred_region
        %s464 = ssub.s32 %s16, 2
        // Predicated region
        $region49: #{tpu_custom_call.1} parent=47 // pred_check
          %p465 = pneg %p127
        $region50: #{tpu_custom_call.1} parent=47 // pred_check_branch
          %467 = sbr.rel (%p465) target = $region52
        $region51: #{tpu_custom_call.1} parent=47 // pred_region
          %s468 = sand.u32 %s112, 1
          %s469 = scalar_lea.sflag [#allocation4], %s468
          %s470 = sand.u32 %s112, 1
          %s471 = smul.addr %s470, 8
          %s472 = scalar_lea.vmem [#allocation7], %s471
          %474 = dma.done %s469, 128
        $region52: #{tpu_custom_call.1} parent=47 // pred_fallthru
          _
      $region48: #{tpu_custom_call.1} parent=5 // pred_fallthru
        _
    $region6: #{tpu_custom_call.1} parent=1 // loop_footer
      %s20 = sadd.s32 1, %s16
    $region7: #{tpu_custom_call.1} parent=1 // loop_footer_branch
      %15 = sbr.rel target = $region3
    $region8: #{tpu_custom_call.1} parent=1 // loop_exit
      _
    %475 = vsyncpa [#allocation3], 1
    %s476 = scalar_lea.sflag [#allocation3], 1
    %477 = vsyncpa %s476, 1
    %478 = vsyncpa [#allocation6], 1
    %479 = vsyncpa [#allocation4], 1
    %s480 = scalar_lea.sflag [#allocation4], 1
    %481 = vsyncpa %s480, 1

</llo_original>
